<compile_context>
chip_gen: v7x
topology: tpu7x:2x2x1
jax: 0.10.0
libtpu: 0.0.40
codegen_flags: <defaults>
</compile_context>

<pallas_src>
from functools import lru_cache, partial

import numpy as np
from numpy import sin, cos, tan, pi, arcsin, arctan

import jax
import jax.numpy as jnp
from jax.experimental import pallas as pl
from jax.experimental.pallas import tpu as pltpu


# ----------------------------------------------------------------------------
# Sphere sampling coordinate generation (host-side numpy, copied from the
# reference module -- trace-time constant precompute, not kernel work).
# ----------------------------------------------------------------------------
@lru_cache(None)
def get_xy(delta_phi, delta_theta):
    return np.array([
        [(-tan(delta_theta), 1 / cos(delta_theta) * tan(delta_phi)),
         (0, tan(delta_phi)),
         (tan(delta_theta), 1 / cos(delta_theta) * tan(delta_phi))],
        [(-tan(delta_theta), 0), (1, 1), (tan(delta_theta), 0)],
        [(-tan(delta_theta), -1 / cos(delta_theta) * tan(delta_phi)),
         (0, -tan(delta_phi)),
         (tan(delta_theta), -1 / cos(delta_theta) * tan(delta_phi))],
    ])


@lru_cache(None)
def cal_index(h, w, img_r, img_c):
    phi = -((img_r + 0.5) / h * pi - pi / 2)
    theta = (img_c + 0.5) / w * 2 * pi - pi
    delta_phi = pi / h
    delta_theta = 2 * pi / w
    xys = get_xy(delta_phi, delta_theta)
    x = xys[..., 0]
    y = xys[..., 1]
    rho = np.sqrt(x ** 2 + y ** 2)
    v = arctan(rho)
    with np.errstate(all="ignore"):
        new_phi = arcsin(cos(v) * sin(phi) + y * sin(v) * cos(phi) / rho)
        new_theta = theta + arctan(
            x * sin(v) / (rho * cos(phi) * cos(v) - y * sin(phi) * sin(v)))
    new_r = (-new_phi + pi / 2) * h / pi - 0.5
    new_c = (new_theta + pi) * w / 2 / pi - 0.5
    new_c = (new_c + w) % w
    new_result = np.stack([new_r, new_c], axis=-1)
    new_result[1, 1] = (img_r, img_c)
    return new_result


@lru_cache(None)
def _gen_filters_coordinates(h, w, stride):
    co = np.array([[cal_index(h, w, i, j) for j in range(0, w, stride)]
                   for i in range(0, h, stride)])
    return np.ascontiguousarray(co.transpose([4, 0, 1, 2, 3]))


def gen_filters_coordinates(h, w, stride=1):
    assert isinstance(h, int) and isinstance(w, int)
    return _gen_filters_coordinates(h, w, stride).copy()


def gen_grid_coordinates(h, w, stride=1):
    coordinates = gen_filters_coordinates(h, w, stride).copy()
    coordinates[0] = coordinates[0] * 2 / h - 1
    coordinates[1] = coordinates[1] * 2 / w - 1
    coordinates = coordinates[::-1]
    coordinates = coordinates.transpose(1, 3, 2, 4, 0)
    sz = coordinates.shape
    coordinates = coordinates.reshape(1, sz[0] * sz[1], sz[2] * sz[3], sz[4])
    return coordinates.copy()


# ----------------------------------------------------------------------------
# Static bilinear-sampling tables (grid_sample align_corners=True, zero pad):
# for every output tap, the 4 corner flat indices into H*W and their weights.
# Pure numpy, cached per (H, W, stride) -- becomes jaxpr constants.
# ----------------------------------------------------------------------------
@lru_cache(None)
def _sphere_sampling_tables(h, w, stride):
    grid = gen_grid_coordinates(h, w, stride)[0].astype(np.float32)  # (3Hs,3Ws,2)
    Hg, Wg = grid.shape[:2]
    Hs, Ws = Hg // 3, Wg // 3
    # Reorder taps to (hs, ws, kh, kw) so the gather output is already the
    # im2col matrix with K ordered (kh, kw, cin).
    g = grid.reshape(Hs, 3, Ws, 3, 2).transpose(0, 2, 1, 3, 4).reshape(-1, 2)
    gx, gy = g[:, 0], g[:, 1]
    ix = (gx + 1.0) * 0.5 * (w - 1)
    iy = (gy + 1.0) * 0.5 * (h - 1)
    ix0 = np.floor(ix)
    iy0 = np.floor(iy)
    ix1 = ix0 + 1.0
    iy1 = iy0 + 1.0
    wx1 = ix - ix0
    wx0 = 1.0 - wx1
    wy1 = iy - iy0
    wy0 = 1.0 - wy1

    idxs, wts = [], []
    for xi, yi, wgt in ((ix0, iy0, wx0 * wy0), (ix1, iy0, wx1 * wy0),
                        (ix0, iy1, wx0 * wy1), (ix1, iy1, wx1 * wy1)):
        valid = (xi >= 0) & (xi <= w - 1) & (yi >= 0) & (yi <= h - 1)
        xi_c = np.clip(xi, 0, w - 1).astype(np.int32)
        yi_c = np.clip(yi, 0, h - 1).astype(np.int32)
        idxs.append(yi_c * w + xi_c)
        wts.append(np.where(valid, wgt, 0.0).astype(np.float32))
    idx4 = np.stack(idxs, axis=0)   # (4, Hs*Ws*9) int32
    wt4 = np.stack(wts, axis=0)     # (4, Hs*Ws*9) float32
    return idx4, wt4, Hs, Ws


def sphere_sample_patches(x_nhwc, idx4, wt4):
    """Bilinear sphere grid-sample + im2col, fused into one XLA gather chain.

    x_nhwc: (B, H, W, C) bf16.  Returns (B*Hs*Ws, 9*C) bf16 patches.
    """
    B, H, W, C = x_nhwc.shape
    P = idx4.shape[1]
    xflat = x_nhwc.reshape(B, H * W, C)
    acc = None
    for c in range(4):
        vals = jnp.take(xflat, jnp.asarray(idx4[c]), axis=1)          # (B, P, C)
        term = vals.astype(jnp.float32) * jnp.asarray(wt4[c])[None, :, None]
        acc = term if acc is None else acc + term
    return acc.astype(jnp.bfloat16).reshape(B * (P // 9), 9 * C)


# ----------------------------------------------------------------------------
# Pallas kernel: LeakyReLU_0.2(patches @ (BN-scaled W) + shift), bf16 stores.
# ----------------------------------------------------------------------------
def _matmul_bias_lrelu_kernel(p_ref, w_ref, b_ref, o_ref):
    acc = jnp.dot(p_ref[...], w_ref[...], preferred_element_type=jnp.float32)
    y = acc + b_ref[...]
    o_ref[...] = jnp.where(y >= 0.0, y, 0.2 * y).astype(o_ref.dtype)


def _round_up(x, m):
    return (x + m - 1) // m * m


@lru_cache(None)
def _vmem_limit_bytes():
    """Per-generation scoped-VMEM budget (3/4 of physical, capped at 100 MiB)."""
    try:
        cap = int(pltpu.get_tpu_info().vmem_capacity_bytes)
    except Exception:
        cap = 64 * 1024 * 1024
    return int(min(cap * 3 // 4, 100 * 1024 * 1024))


def _choose_m_tiling(M):
    """Returns (M_pad, TM).  Prefers >=2 tiles (megacore sharding on multi-TC
    chips) and 512-row tiles for large M (amortizes per-step overhead)."""
    if M % 512 == 0 and M > 512:
        return M, 512
    if M % 256 == 0 and M > 256:
        return M, 256
    if M % 128 == 0 and M >= 256:
        return M, 128
    if M <= 1024:
        return M, M                       # single full-extent tile, no padding
    Mp = _round_up(M, 512)
    return Mp, 512


def fused_conv_bn_lrelu(patches, wmat, shift_row):
    """patches: (M, K) bf16, wmat: (K, N) bf16 (BN scale folded), shift_row:
    (1, N) f32.  Returns (M, N) bf16 = LeakyReLU_0.2(patches @ wmat + shift).

    No K grid axis: K <= 2304 here so one resident K slab per step is optimal
    (revisit with a K axis + VMEM accumulator only if Cin grows much larger).
    """
    M, K = patches.shape
    N = wmat.shape[1]
    M_pad, TM = _choose_m_tiling(M)

    p = patches
    if M_pad != M:
        p = jnp.pad(p, ((0, M_pad - M), (0, 0)))

    out = pl.pallas_call(
        _matmul_bias_lrelu_kernel,
        out_shape=jax.ShapeDtypeStruct((M_pad, N), jnp.bfloat16),
        grid=(M_pad // TM,),
        in_specs=[
            pl.BlockSpec((TM, K), lambda i: (i, 0)),   # patch tile (streamed)
            pl.BlockSpec((K, N), lambda i: (0, 0)),    # full weight (resident)
            pl.BlockSpec((1, N), lambda i: (0, 0)),    # BN shift   (resident)
        ],
        out_specs=pl.BlockSpec((TM, N), lambda i: (i, 0)),
        compiler_params=pltpu.CompilerParams(
            dimension_semantics=("parallel",),
            vmem_limit_bytes=_vmem_limit_bytes(),
        ),
    )(p, wmat, shift_row)

    if M_pad != M:
        out = out[:M]
    return out


# ----------------------------------------------------------------------------
# Glue (plain JAX, NHWC): upsample + avg-pool for the feature head.
# ----------------------------------------------------------------------------
def upsample_bilinear_nhwc(x, oh, ow):
    """nn.UpsamplingBilinear2d(size=(oh, ow)) i.e. bilinear, align_corners=True."""
    B, H, W, C = x.shape
    ys = jnp.arange(oh, dtype=jnp.float32) * ((H - 1) / max(oh - 1, 1))
    xs = jnp.arange(ow, dtype=jnp.float32) * ((W - 1) / max(ow - 1, 1))
    y0 = jnp.floor(ys).astype(jnp.int32)
    x0 = jnp.floor(xs).astype(jnp.int32)
    y1 = jnp.minimum(y0 + 1, H - 1)
    x1 = jnp.minimum(x0 + 1, W - 1)
    wy = (ys - y0.astype(jnp.float32))[None, :, None, None]
    wx = (xs - x0.astype(jnp.float32))[None, None, :, None]
    rows0 = jnp.take(x, y0, axis=1)
    rows1 = jnp.take(x, y1, axis=1)
    v00 = jnp.take(rows0, x0, axis=2)
    v01 = jnp.take(rows0, x1, axis=2)
    v10 = jnp.take(rows1, x0, axis=2)
    v11 = jnp.take(rows1, x1, axis=2)
    top = v00 * (1.0 - wx) + v01 * wx
    bot = v10 * (1.0 - wx) + v11 * wx
    return top * (1.0 - wy) + bot * wy


def avg_pool2d_nhwc(x, patch_size):
    ph, pw = patch_size
    B, H, W, C = x.shape
    return x.reshape(B, H // ph, ph, W // pw, pw, C).mean(axis=(2, 4))


# ----------------------------------------------------------------------------
# SphereConv2D + BatchNorm + LeakyReLU layer (conv hot path runs in Pallas).
# ----------------------------------------------------------------------------
def sphere_conv_bn_lrelu_layer(x_nhwc, wmat, shift_row, stride):
    B, H, W, Cin = x_nhwc.shape
    Cout = wmat.shape[1]
    idx4, wt4, Hs, Ws = _sphere_sampling_tables(H, W, stride)
    patches = sphere_sample_patches(x_nhwc, idx4, wt4)       # (M, 9*Cin) bf16
    out = fused_conv_bn_lrelu(patches, wmat, shift_row)      # (M, Cout)  bf16
    return out.reshape(B, Hs, Ws, Cout)                      # NHWC bf16


# ----------------------------------------------------------------------------
# Parameters. BatchNorm2d is folded (inference mode) into per-channel
# scale/shift; the scale is folded into the weight ONCE here (hoisted out of
# the forward path), weights stored pre-transposed to im2col layout in bf16.
# ----------------------------------------------------------------------------
def init_params(key):
    params = {}
    layer_defs = [("conv1", 3, 64), ("conv2", 64, 128),
                  ("conv3", 128, 256), ("conv3_5", 256, 512)]
    eps = 1e-5
    for name, cin, cout in layer_defs:
        key, k1, k2, k3 = jax.random.split(key, 4)
        fan_in = cin * 9
        bound = 1.0 / np.sqrt(fan_in)  # kaiming_uniform_(a=sqrt(5)) bound
        w = jax.random.uniform(k1, (cout, cin, 3, 3), jnp.float32, -bound, bound)
        gamma = jax.random.uniform(k2, (cout,), jnp.float32, 0.9, 1.1)
        beta = jax.random.uniform(k3, (cout,), jnp.float32, -0.1, 0.1)
        run_mean = jnp.zeros((cout,), jnp.float32)
        run_var = jnp.ones((cout,), jnp.float32)
        scale = gamma / jnp.sqrt(run_var + eps)
        shift = beta - run_mean * scale
        # (cout, cin, 3, 3) -> (kh, kw, cin, cout) -> (9*cin, cout), BN folded.
        wmat = (w.transpose(2, 3, 1, 0).reshape(9 * cin, cout)
                * scale[None, :]).astype(jnp.bfloat16)
        params[name] = dict(wmat=wmat, shift=shift.reshape(1, cout))
    return params


# ----------------------------------------------------------------------------
# Sphere_CNN forward.
# ----------------------------------------------------------------------------
def sphere_cnn_forward(image, params, output_dim=192, out_h=16, out_w=32,
                       patch_size=(8, 8)):
    p = params
    # NCHW -> NHWC once at the boundary; activations stay bf16 between layers.
    x = jnp.transpose(image, (0, 2, 3, 1)).astype(jnp.bfloat16)
    x1 = sphere_conv_bn_lrelu_layer(x, p["conv1"]["wmat"], p["conv1"]["shift"], 2)
    x2 = sphere_conv_bn_lrelu_layer(x1, p["conv2"]["wmat"], p["conv2"]["shift"], 2)
    x3 = sphere_conv_bn_lrelu_layer(x2, p["conv3"]["wmat"], p["conv3"]["shift"], 2)
    x4 = sphere_conv_bn_lrelu_layer(x3, p["conv3_5"]["wmat"], p["conv3_5"]["shift"], 2)

    up = lambda t: upsample_bilinear_nhwc(t.astype(jnp.float32), out_h, out_w)
    features = None
    if output_dim == 192:
        features = jnp.concatenate([up(x1), up(x2)], axis=-1)
    elif output_dim == 384:
        features = jnp.concatenate([up(x2), up(x3)], axis=-1)
    elif output_dim == 448:
        features = jnp.concatenate([up(x1), up(x2), up(x3)], axis=-1)
    elif output_dim == 320:
        # Mirrors the reference exactly: it concatenates up(x1) with up(x4)
        # (64 + 512 channels) despite the branch name.
        features = jnp.concatenate([up(x1), up(x4)], axis=-1)
    elif output_dim == 576:
        features = jnp.concatenate([up(x1), up(x4)], axis=-1)

    if output_dim != 512:
        features = avg_pool2d_nhwc(features, patch_size)
        B, Hp, Wp, C = features.shape
        enc_inputs = features.reshape(B, Hp * Wp, C)   # == flatten(2).permute(0,2,1)
    else:
        B, Hs, Ws, C = x4.shape
        enc_inputs = x4.reshape(B, Hs * Ws, C).astype(jnp.float32)
    return enc_inputs


if __name__ == "__main__":
    key = jax.random.PRNGKey(0)
    key, ki = jax.random.split(key)
    # small shapes: B=2, C=3, H=16, W=32; out_h/out_w match, patch_size=(8,8)
    image = jax.random.normal(ki, (2, 3, 16, 32), dtype=jnp.float32)
    params = init_params(key)

    fwd = jax.jit(partial(sphere_cnn_forward, output_dim=192, out_h=16,
                          out_w=32, patch_size=(8, 8)))
    out = fwd(image, params)
    out = jax.block_until_ready(out)
    assert out.shape == (2, 8, 192), out.shape
    assert jnp.isfinite(out).all()
    print("KERNEL_OK")
</pallas_src>

<mosaic_0001>
module attributes {stable_mosaic.version = 11 : i64} {
  func.func @_matmul_bias_lrelu_kernel(%arg0: i32, %arg1: memref<128x27xbf16, #tpu.memory_space<vmem>>, %arg2: memref<27x64xbf16, #tpu.memory_space<vmem>>, %arg3: memref<1x64xf32, #tpu.memory_space<vmem>>, %arg4: memref<128x64xbf16, #tpu.memory_space<vmem>>) attributes {dimension_semantics = [#tpu.dimension_semantics<parallel>], iteration_bounds = array<i64: 2>, scalar_prefetch = 0 : i64, scratch_operands = 0 : i64, tpu.core_type = #tpu.core_type<tc>, window_params = [{transform_indices = @transform_0, window_bounds = array<i64: 128, 27>}, {pipeline_mode = #tpu.pipeline_mode<synchronous>, transform_indices = @transform_1, window_bounds = array<i64: 27, 64>}, {pipeline_mode = #tpu.pipeline_mode<synchronous>, transform_indices = @transform_2, window_bounds = array<i64: 1, 64>}, {transform_indices = @transform_3, window_bounds = array<i64: 128, 64>}]} {
    %c0 = arith.constant 0 : index
    %c0_0 = arith.constant 0 : index
    %0 = vector.load %arg1[%c0, %c0_0] : memref<128x27xbf16, #tpu.memory_space<vmem>>, vector<128x27xbf16>
    %c0_1 = arith.constant 0 : index
    %c0_2 = arith.constant 0 : index
    %1 = vector.load %arg2[%c0_1, %c0_2] : memref<27x64xbf16, #tpu.memory_space<vmem>>, vector<27x64xbf16>
    %cst = arith.constant dense<0.000000e+00> : vector<128x64xf32>
    %2 = tpu.matmul %0, %1, %cst {dimension_numbers = #tpu.dot_dimension_numbers<[1], [0], [0], [1], [0, 0, 1, 1], [], []>} : vector<128x27xbf16>, vector<27x64xbf16>, vector<128x64xf32> -> vector<128x64xf32>
    %c0_3 = arith.constant 0 : index
    %c0_4 = arith.constant 0 : index
    %3 = vector.load %arg3[%c0_3, %c0_4] : memref<1x64xf32, #tpu.memory_space<vmem>>, vector<1x64xf32>
    %4 = vector.broadcast %3 : vector<1x64xf32> to vector<128x64xf32>
    %5 = arith.addf %2, %4 : vector<128x64xf32>
    %cst_5 = arith.constant 0.000000e+00 : f32
    %6 = vector.broadcast %cst_5 : f32 to vector<128x64xf32>
    %7 = arith.cmpf oge, %5, %6 : vector<128x64xf32>
    %cst_6 = arith.constant 2.000000e-01 : f32
    %8 = vector.broadcast %cst_6 : f32 to vector<128x64xf32>
    %9 = arith.mulf %8, %5 : vector<128x64xf32>
    %10 = arith.select %7, %5, %9 : vector<128x64xi1>, vector<128x64xf32>
    %11 = arith.truncf %10 : vector<128x64xf32> to vector<128x64xbf16>
    %c0_7 = arith.constant 0 : index
    %c0_8 = arith.constant 0 : index
    %12 = vector.load %arg4[%c0_7, %c0_8] : memref<128x64xbf16, #tpu.memory_space<vmem>>, vector<128x64xbf16>
    tpu.vector_store %arg4[%c0_7, %c0_8], %11 {strides = array<i32>} : memref<128x64xbf16, #tpu.memory_space<vmem>>, vector<128x64xbf16>,
    return
  }
  func.func @transform_0(%arg0: i32) -> (i32, i32) {
    %c0_i32 = arith.constant 0 : i32
    %c0_i32_0 = arith.constant 0 : i32
    return %arg0, %c0_i32 : i32, i32
  }
  func.func @transform_1(%arg0: i32) -> (i32, i32) {
    %c0_i32 = arith.constant 0 : i32
    %c0_i32_0 = arith.constant 0 : i32
    %c0_i32_1 = arith.constant 0 : i32
    return %c0_i32, %c0_i32_0 : i32, i32
  }
  func.func @transform_2(%arg0: i32) -> (i32, i32) {
    %c0_i32 = arith.constant 0 : i32
    %c0_i32_0 = arith.constant 0 : i32
    %c0_i32_1 = arith.constant 0 : i32
    return %c0_i32, %c0_i32_0 : i32, i32
  }
  func.func @transform_3(%arg0: i32) -> (i32, i32) {
    %c0_i32 = arith.constant 0 : i32
    %c0_i32_0 = arith.constant 0 : i32
    return %arg0, %c0_i32 : i32, i32
  }
}

module attributes {stable_mosaic.version = 11 : i64} {
  func.func @_matmul_bias_lrelu_kernel(%arg0: i32, %arg1: memref<64x576xbf16, #tpu.memory_space<vmem>>, %arg2: memref<576x128xbf16, #tpu.memory_space<vmem>>, %arg3: memref<1x128xf32, #tpu.memory_space<vmem>>, %arg4: memref<64x128xbf16, #tpu.memory_space<vmem>>) attributes {dimension_semantics = [#tpu.dimension_semantics<parallel>], iteration_bounds = array<i64: 1>, scalar_prefetch = 0 : i64, scratch_operands = 0 : i64, tpu.core_type = #tpu.core_type<tc>, window_params = [{transform_indices = @transform_0, window_bounds = array<i64: 64, 576>}, {pipeline_mode = #tpu.pipeline_mode<synchronous>, transform_indices = @transform_1, window_bounds = array<i64: 576, 128>}, {pipeline_mode = #tpu.pipeline_mode<synchronous>, transform_indices = @transform_2, window_bounds = array<i64: 1, 128>}, {transform_indices = @transform_3, window_bounds = array<i64: 64, 128>}]} {
    %c0 = arith.constant 0 : index
    %c0_0 = arith.constant 0 : index
    %0 = vector.load %arg1[%c0, %c0_0] : memref<64x576xbf16, #tpu.memory_space<vmem>>, vector<64x576xbf16>
    %c0_1 = arith.constant 0 : index
    %c0_2 = arith.constant 0 : index
    %1 = vector.load %arg2[%c0_1, %c0_2] : memref<576x128xbf16, #tpu.memory_space<vmem>>, vector<576x128xbf16>
    %cst = arith.constant dense<0.000000e+00> : vector<64x128xf32>
    %2 = tpu.matmul %0, %1, %cst {dimension_numbers = #tpu.dot_dimension_numbers<[1], [0], [0], [1], [0, 0, 1, 1], [], []>} : vector<64x576xbf16>, vector<576x128xbf16>, vector<64x128xf32> -> vector<64x128xf32>
    %c0_3 = arith.constant 0 : index
    %c0_4 = arith.constant 0 : index
    %3 = vector.load %arg3[%c0_3, %c0_4] : memref<1x128xf32, #tpu.memory_space<vmem>>, vector<1x128xf32>
    %4 = vector.broadcast %3 : vector<1x128xf32> to vector<64x128xf32>
    %5 = arith.addf %2, %4 : vector<64x128xf32>
    %cst_5 = arith.constant 0.000000e+00 : f32
    %6 = vector.broadcast %cst_5 : f32 to vector<64x128xf32>
    %7 = arith.cmpf oge, %5, %6 : vector<64x128xf32>
    %cst_6 = arith.constant 2.000000e-01 : f32
    %8 = vector.broadcast %cst_6 : f32 to vector<64x128xf32>
    %9 = arith.mulf %8, %5 : vector<64x128xf32>
    %10 = arith.select %7, %5, %9 : vector<64x128xi1>, vector<64x128xf32>
    %11 = arith.truncf %10 : vector<64x128xf32> to vector<64x128xbf16>
    %c0_7 = arith.constant 0 : index
    %c0_8 = arith.constant 0 : index
    %12 = vector.load %arg4[%c0_7, %c0_8] : memref<64x128xbf16, #tpu.memory_space<vmem>>, vector<64x128xbf16>
    tpu.vector_store %arg4[%c0_7, %c0_8], %11 {strides = array<i32>} : memref<64x128xbf16, #tpu.memory_space<vmem>>, vector<64x128xbf16>,
    return
  }
  func.func @transform_0(%arg0: i32) -> (i32, i32) {
    %c0_i32 = arith.constant 0 : i32
    %c0_i32_0 = arith.constant 0 : i32
    return %arg0, %c0_i32 : i32, i32
  }
  func.func @transform_1(%arg0: i32) -> (i32, i32) {
    %c0_i32 = arith.constant 0 : i32
    %c0_i32_0 = arith.constant 0 : i32
    %c0_i32_1 = arith.constant 0 : i32
    return %c0_i32, %c0_i32_0 : i32, i32
  }
  func.func @transform_2(%arg0: i32) -> (i32, i32) {
    %c0_i32 = arith.constant 0 : i32
    %c0_i32_0 = arith.constant 0 : i32
    %c0_i32_1 = arith.constant 0 : i32
    return %c0_i32, %c0_i32_0 : i32, i32
  }
  func.func @transform_3(%arg0: i32) -> (i32, i32) {
    %c0_i32 = arith.constant 0 : i32
    %c0_i32_0 = arith.constant 0 : i32
    return %arg0, %c0_i32 : i32, i32
  }
}

</mosaic_0001>

<llo_original>
// kernel: sphere_cnn_forward.2
$region0: #{sphere_cnn_forward.2}
  #allocation0 [shape = 'u32[]', space=smem, size = 0x4, offset = 0x4, fixed_abs, tag = 'smem constant byte address 0x4 - core index']
  #allocation1 [shape = 'u32[144,128]{1,0:T(1,128)}', space=vmem, size = 0x12000, scoped, tag = 'internal scratch']
  %s0 = inlined_call_operand.vmem [shape: bf16[256,27], index: 0, kind: input, shape index: {}]
  %s1 = inlined_call_operand.vmem [shape: bf16[27,64], index: 1, kind: input, shape index: {}]
  %s2 = inlined_call_operand.vmem [shape: f32[1,64], index: 2, kind: input, shape index: {}]
  %s3 = inlined_call_operand.vmem [shape: bf16[256,64], index: 3, kind: output, shape index: {}]
  %s4 = sld [smem:[#allocation0]]
  $region45: #{sphere_cnn_forward.2} parent=0
    _
  %s6 = ssub.s32 1, %s4
  %s7 = scalar_select 0, %s6, %s4
  loop: start=0, step=1, limit=4
  $region2: #{sphere_cnn_forward.2} parent=0 // loop_pre_header
    _
  $region3: #{sphere_cnn_forward.2} parent=0 // loop_header
    %s9 = sphi 0, %s13
    %p10 = scmp.ge.s32.totalorder %s9, 4
    %s19 = sphi 0, %s21
    %s22 = sphi 0, %s19
    %s23 = sphi 0, %s22
    %s39 = sphi 0, %s23
    %s43 = sphi 0, %s43
    %s45 = sphi 0, %s43
    %s46 = sphi 0, %s45
    %s60 = sphi 0, %s46
    %s64 = sphi 0, %s64
    %s66 = sphi 0, %s64
    %s67 = sphi 0, %s66
    %s81 = sphi 0, %s67
    %s87 = sphi 0, %s89
    %s90 = sphi 0, %s87
    %s91 = sphi 0, %s90
    %s107 = sphi 0, %s91
  $region4: #{sphere_cnn_forward.2} parent=0 // loop_header_branch
    %12 = sbr.rel (%p10) target = $region8
  $region5: #{sphere_cnn_forward.2} parent=0 // loop_body
    %s14 = ssub.s32 %s9, 1
    %s15 = ssub.s32 %s9, 2
    %s16 = sadd.s32 %s9, 1
    %s17 = ssub.s32 %s9, %s16
    %p18 = scmp.eq.s32.totalorder %s17, 0
    %s20 = sadd.s32 %s19, 1
    %s21 = scalar_select %p18, %s19, %s20
    %p24 = pneg %p18
    %p25 = scmp.eq.s32.totalorder %s9, 1
    %p26 = por %p24, %p25
    %p27 = scmp.ne.s32.totalorder %s19, %s22
    %p28 = scmp.eq.s32.totalorder %s9, 0
    %p29 = por %p27, %p28
    %p30 = scmp.ne.s32.totalorder %s19, %s22
    %p31 = scmp.eq.s32.totalorder %s14, 1
    %p32 = por %p30, %p31
    %p33 = scmp.ne.s32.totalorder %s22, %s23
    %p34 = scmp.eq.s32.totalorder %s14, 0
    %p35 = por %p33, %p34
    %p36 = scmp.ne.s32.totalorder %s22, %s23
    %p37 = scmp.eq.s32.totalorder %s15, 1
    %p38 = por %p36, %p37
    %p40 = scmp.ne.s32.totalorder %s23, %s39
    %p41 = scmp.eq.s32.totalorder %s15, 0
    %p42 = por %p40, %p41
    %s44 = sadd.s32 %s43, 1
    %p47 = scmp.eq.s32.totalorder %s9, 1
    %p48 = scmp.ne.s32.totalorder %s43, %s45
    %p49 = scmp.eq.s32.totalorder %s9, 0
    %p50 = por %p48, %p49
    %p51 = scmp.ne.s32.totalorder %s43, %s45
    %p52 = scmp.eq.s32.totalorder %s14, 1
    %p53 = por %p51, %p52
    %p54 = scmp.ne.s32.totalorder %s45, %s46
    %p55 = scmp.eq.s32.totalorder %s14, 0
    %p56 = por %p54, %p55
    %p57 = scmp.ne.s32.totalorder %s45, %s46
    %p58 = scmp.eq.s32.totalorder %s15, 1
    %p59 = por %p57, %p58
    %p61 = scmp.ne.s32.totalorder %s46, %s60
    %p62 = scmp.eq.s32.totalorder %s15, 0
    %p63 = por %p61, %p62
    %s65 = sadd.s32 %s64, 1
    %p68 = scmp.eq.s32.totalorder %s9, 1
    %p69 = scmp.ne.s32.totalorder %s64, %s66
    %p70 = scmp.eq.s32.totalorder %s9, 0
    %p71 = por %p69, %p70
    %p72 = scmp.ne.s32.totalorder %s64, %s66
    %p73 = scmp.eq.s32.totalorder %s14, 1
    %p74 = por %p72, %p73
    %p75 = scmp.ne.s32.totalorder %s66, %s67
    %p76 = scmp.eq.s32.totalorder %s14, 0
    %p77 = por %p75, %p76
    %p78 = scmp.ne.s32.totalorder %s66, %s67
    %p79 = scmp.eq.s32.totalorder %s15, 1
    %p80 = por %p78, %p79
    %p82 = scmp.ne.s32.totalorder %s67, %s81
    %p83 = scmp.eq.s32.totalorder %s15, 0
    %p84 = por %p82, %p83
    %s85 = ssub.s32 %s9, %s16
    %p86 = scmp.eq.s32.totalorder %s85, 0
    %s88 = sadd.s32 %s87, 1
    %s89 = scalar_select %p86, %s87, %s88
    %p92 = pneg %p86
    %p93 = scmp.eq.s32.totalorder %s9, 1
    %p94 = por %p92, %p93
    %p95 = scmp.ne.s32.totalorder %s87, %s90
    %p96 = scmp.eq.s32.totalorder %s9, 0
    %p97 = por %p95, %p96
    %p98 = scmp.ne.s32.totalorder %s87, %s90
    %p99 = scmp.eq.s32.totalorder %s14, 1
    %p100 = por %p98, %p99
    %p101 = scmp.ne.s32.totalorder %s90, %s91
    %p102 = scmp.eq.s32.totalorder %s14, 0
    %p103 = por %p101, %p102
    %p104 = scmp.ne.s32.totalorder %s90, %s91
    %p105 = scmp.eq.s32.totalorder %s15, 1
    %p106 = por %p104, %p105
    %p108 = scmp.ne.s32.totalorder %s91, %s107
    %p109 = scmp.eq.s32.totalorder %s15, 0
    %p110 = por %p108, %p109
    %p111 = scmp.le.s32.totalorder 1, %s9
    %p112 = scmp.lt.s32.totalorder %s9, 3
    %p113 = pnand %p111, %p112
    %p114 = pneg %p113
    // Predicated region
    $region9: #{sphere_cnn_forward.2} parent=5 // pred_check
      _
    $region10: #{sphere_cnn_forward.2} parent=5 // pred_check_branch
      %116 = sbr.rel (%p113) target = $region12
    $region11: #{sphere_cnn_forward.2} parent=5 // pred_region
      %s117 = ssub.s32 %s9, 1
      // Predicated region
      $region13: #{sphere_cnn_forward.2} parent=11 // pred_check
        %p118 = pneg %p56
      $region14: #{sphere_cnn_forward.2} parent=11 // pred_check_branch
        %120 = sbr.rel (%p118) target = $region16
      $region15: #{sphere_cnn_forward.2} parent=11 // pred_region
        _
      $region16: #{sphere_cnn_forward.2} parent=11 // pred_fallthru
        _
      // Predicated region
      $region17: #{sphere_cnn_forward.2} parent=11 // pred_check
        %p121 = pneg %p77
      $region18: #{sphere_cnn_forward.2} parent=11 // pred_check_branch
        %123 = sbr.rel (%p121) target = $region20
      $region19: #{sphere_cnn_forward.2} parent=11 // pred_region
        _
      $region20: #{sphere_cnn_forward.2} parent=11 // pred_fallthru
        _
    $region12: #{sphere_cnn_forward.2} parent=5 // pred_fallthru
      _
    %p124 = scmp.lt.s32.totalorder %s9, 2
    // Predicated region
    $region21: #{sphere_cnn_forward.2} parent=5 // pred_check
      %p125 = pneg %p124
    $region22: #{sphere_cnn_forward.2} parent=5 // pred_check_branch
      %127 = sbr.rel (%p125) target = $region24
    $region23: #{sphere_cnn_forward.2} parent=5 // pred_region
      // Predicated region
      $region25: #{sphere_cnn_forward.2} parent=23 // pred_check
        %p128 = pneg %p29
      $region26: #{sphere_cnn_forward.2} parent=23 // pred_check_branch
        %130 = sbr.rel (%p128) target = $region28
      $region27: #{sphere_cnn_forward.2} parent=23 // pred_region
        %s131 = smul.u32 16, %s9
        %p132 = scmp.lt.s32.totalorder %s131, 31
        %s133 = scalar_select %p132, %s131, 31
        %s134 = smul.addr %s133, 4
        %s135 = scalar_lea.vmem %s0, %s134
        %s136 = smul.u32 16, %s9
      $region28: #{sphere_cnn_forward.2} parent=23 // pred_fallthru
        _
    $region24: #{sphere_cnn_forward.2} parent=5 // pred_fallthru
      _
    %p137 = scmp.le.s32.totalorder 1, %s9
    %p138 = scmp.lt.s32.totalorder %s9, 3
    %p139 = pnand %p137, %p138
    %p140 = pneg %p139
    // Predicated region
    $region29: #{sphere_cnn_forward.2} parent=5 // pred_check
      _
    $region30: #{sphere_cnn_forward.2} parent=5 // pred_check_branch
      %142 = sbr.rel (%p139) target = $region32
    $region31: #{sphere_cnn_forward.2} parent=5 // pred_region
      %s143 = ssub.s32 %s9, 1
      %s144 = smul.u32 16, %s14
      %p145 = scmp.lt.s32.totalorder %s144, 31
      %s146 = scalar_select %p145, %s144, 31
      %s147 = smul.addr %s146, 4
      %s148 = scalar_lea.vmem %s0, %s147
      %p149 = pneg %p35
      %p150 = pneg %p32
      %p151 = pneg %p56
      %p152 = pneg %p53
      %p153 = pneg %p77
      %p154 = pneg %p74
      %p155 = pneg %p103
      %p156 = pneg %p100
      %s157 = smul.u32 16, %s14
      %p158 = scmp.lt.s32.totalorder %s157, 31
      %s159 = scalar_select %p158, %s157, 31
      %s160 = smul.addr %s159, 4
      %s161 = scalar_lea.vmem %s3, %s160
      %s162 = smul.u32 16, %s14
      %p163 = scmp.lt.s32.totalorder %s162, 31
      %s164 = scalar_select %p163, %s162, 31
      %s165 = smul.addr %s164, 4
      %s166 = scalar_lea.vmem %s0, %s165
      %s167 = smul.u32 16, %s14
      %s168 = smul.u32 16, %s14
      %p169 = scmp.lt.s32.totalorder %s168, 31
      %s170 = scalar_select %p169, %s168, 31
      %s171 = smul.addr %s170, 4
      %s172 = scalar_lea.vmem %s3, %s171
      %s173 = smul.u32 16, %s14
      %v175 = vld [vmem:[%s166] sm:$0xf]
      %v176 = vld [vmem:[%s166 + $0x4] sm:$0xf]
      %v177 = vld [vmem:[%s166 + $0x8] sm:$0xf]
      %v178 = vld [vmem:[%s166 + $0xc] sm:$0xf]
      %v179 = vld [vmem:[%s166 + $0x10] sm:$0xf]
      %v180 = vld [vmem:[%s166 + $0x14] sm:$0xf]
      %v181 = vld [vmem:[%s166 + $0x18] sm:$0xf]
      %v182 = vld [vmem:[%s166 + $0x1c] sm:$0xf]
      %v183 = vld [vmem:[%s166 + $0x20] sm:$0xf]
      %v184 = vld [vmem:[%s166 + $0x24] sm:$0xf]
      %v185 = vld [vmem:[%s166 + $0x28] sm:$0xf]
      %v186 = vld [vmem:[%s166 + $0x2c] sm:$0xf]
      %v187 = vld [vmem:[%s166 + $0x30] sm:$0xf]
      %v188 = vld [vmem:[%s166 + $0x34] sm:$0xf]
      %v189 = vld [vmem:[%s166 + $0x38] sm:$0xf]
      %v190 = vld [vmem:[%s166 + $0x3c] sm:$0xf]
      %v191 = vld [vmem:[%s1] sm:$0xf]
      %v192 = vld [vmem:[%s1 + $0x4] sm:$0xf]
      %v193 = vld [vmem:[%s1 + $0x8] sm:$0xf]
      %v194 = vld [vmem:[%s1 + $0xc] sm:$0x3]
      %v195 = vld [vmem:[%s2] sm:$0x1]
      %v197 = vlaneseq
      %v198 = vshrl.u32 %v197, 7
      %v199 = vsub.s32 0, %v198
      %v200 = vrot.slane %v195, %v199
      %v218 = vunpack.c.l.b16 %v175
      %v219 = vunpack.c.l.b16 %v176
      %v220 = vunpack.c.l.b16 %v177
      %v221 = vunpack.c.l.b16 %v178
      %v222 = vunpack.c.l.b16 %v179
      %v223 = vunpack.c.l.b16 %v180
      %v224 = vunpack.c.l.b16 %v181
      %v225 = vunpack.c.l.b16 %v182
      %v226 = vunpack.c.l.b16 %v183
      %v227 = vunpack.c.l.b16 %v184
      %v228 = vunpack.c.l.b16 %v185
      %v229 = vunpack.c.l.b16 %v186
      %v230 = vunpack.c.l.b16 %v187
      %v231 = vunpack.c.l.b16 %v188
      %v232 = vunpack.c.l.b16 %v189
      %v233 = vunpack.c.l.b16 %v190
      %v234 = vpack.c.b16 %v219, %v218
      %v235 = vpack.c.b16 %v221, %v220
      %v236 = vpack.c.b16 %v223, %v222
      %v237 = vpack.c.b16 %v225, %v224
      %v238 = vpack.c.b16 %v227, %v226
      %v239 = vpack.c.b16 %v229, %v228
      %v240 = vpack.c.b16 %v231, %v230
      %v241 = vpack.c.b16 %v233, %v232
      %v246 = vunpack.c.l.b16 %v191
      %v247 = vunpack.c.l.b16 %v192
      %v248 = vunpack.c.l.b16 %v193
      %v249 = vunpack.c.l.b16 %v194
      %v250 = vpack.c.b16 %v247, %v246
      %v251 = vpack.c.b16 %v249, %v248
      %vm253 = vcmask 220160
      %v255 = vsel %vm253, %v234, 0
      %v258 = vsel %vm253, %v235, 0
      %v261 = vsel %vm253, %v236, 0
      %v264 = vsel %vm253, %v237, 0
      %v267 = vsel %vm253, %v238, 0
      %v270 = vsel %vm253, %v239, 0
      %v273 = vsel %vm253, %v240, 0
      %v276 = vsel %vm253, %v241, 0
      %vm278 = vcmask 1044480
      %vm279 = vcmask 1045504
      %v280 = vsel %vm278, 4294967295, 65535
      %v281 = vsel %vm279, %v280, 0
      %v283 = vand.u32 %v251, %v281
      %285 = vmatprep.subr.bf16.mxu0 0
      %286 = vmatpush1.bf16.msra.mxu0 %v250
      %287 = vmatprep.subr.bf16.mxu0 0
      %288 = vmatpush1.bf16.msra.mxu0 %v283
      %289 = vmatprep.subr.bf16.mxu0 0
      %290 = vmatpush1.bf16.msra.mxu0 0
      %291 = vmatprep.subr.bf16.mxu0 0
      %292 = vmatpush1.bf16.msra.mxu0 0
      %293 = vmatprep.subr.bf16.mxu0 0
      %294 = vmatpush1.bf16.msra.mxu0 0
      %295 = vmatprep.subr.bf16.mxu0 0
      %296 = vmatpush1.bf16.msra.mxu0 0
      %297 = vmatprep.subr.bf16.mxu0 0
      %298 = vmatpush1.bf16.msra.mxu0 0
      %299 = vmatprep.subr.bf16.mxu0 0
      %300 = vmatpush1.bf16.msra.mxu0 0
      %301 = vmatprep.subr.bf16.mxu0 0
      %302 = vmatpush1.bf16.msra.mxu0 0
      %303 = vmatprep.subr.bf16.mxu0 0
      %304 = vmatpush1.bf16.msra.mxu0 0
      %305 = vmatprep.subr.bf16.mxu0 0
      %306 = vmatpush1.bf16.msra.mxu0 0
      %307 = vmatprep.subr.bf16.mxu0 0
      %308 = vmatpush1.bf16.msra.mxu0 0
      %309 = vmatprep.subr.bf16.mxu0 0
      %310 = vmatpush1.bf16.msra.mxu0 0
      %311 = vmatprep.subr.bf16.mxu0 0
      %312 = vmatpush1.bf16.msra.mxu0 0
      %313 = vmatprep.subr.bf16.mxu0 0
      %314 = vmatpush1.bf16.msra.mxu0 0
      %315 = vmatprep.subr.bf16.mxu0 0
      %316 = vmatpush1.bf16.msra.mxu0 0
      %317 = vmatprep.mubr.bf16.mxu0 0
      %318 = vmatmul.mubr.bf16.gmra.mrb[0].mxu0 %v255
      %v319 = vpop.f32.mrb[0].mxu0
      %v320 = vadd.f32 %v200, %v319
      %v321 = vpop.f32.mrb[0].mxu0
      %v322 = vpop.f32.mrb[0].mxu0
      %v323 = vadd.f32 %v200, %v322
      %v324 = vpop.f32.mrb[0].mxu0
      %325 = vmatprep.mubr.bf16.mxu0 0
      %326 = vmatmul.mubr.bf16.gmra.mrb[0].mxu0 %v258
      %v327 = vpop.f32.mrb[0].mxu0
      %v328 = vadd.f32 %v200, %v327
      %v329 = vpop.f32.mrb[0].mxu0
      %v330 = vpop.f32.mrb[0].mxu0
      %v331 = vadd.f32 %v200, %v330
      %v332 = vpop.f32.mrb[0].mxu0
      %333 = vmatprep.mubr.bf16.mxu0 0
      %334 = vmatmul.mubr.bf16.gmra.mrb[0].mxu0 %v261
      %v335 = vpop.f32.mrb[0].mxu0
      %v336 = vadd.f32 %v200, %v335
      %v337 = vpop.f32.mrb[0].mxu0
      %v338 = vpop.f32.mrb[0].mxu0
      %v339 = vadd.f32 %v200, %v338
      %v340 = vpop.f32.mrb[0].mxu0
      %341 = vmatprep.mubr.bf16.mxu0 0
      %342 = vmatmul.mubr.bf16.gmra.mrb[0].mxu0 %v264
      %v343 = vpop.f32.mrb[0].mxu0
      %v344 = vadd.f32 %v200, %v343
      %v345 = vpop.f32.mrb[0].mxu0
      %v346 = vpop.f32.mrb[0].mxu0
      %v347 = vadd.f32 %v200, %v346
      %v348 = vpop.f32.mrb[0].mxu0
      %349 = vmatprep.mubr.bf16.mxu0 0
      %350 = vmatmul.mubr.bf16.gmra.mrb[0].mxu0 %v267
      %v351 = vpop.f32.mrb[0].mxu0
      %v352 = vadd.f32 %v200, %v351
      %v353 = vpop.f32.mrb[0].mxu0
      %v354 = vpop.f32.mrb[0].mxu0
      %v355 = vadd.f32 %v200, %v354
      %v356 = vpop.f32.mrb[0].mxu0
      %357 = vmatprep.mubr.bf16.mxu0 0
      %358 = vmatmul.mubr.bf16.gmra.mrb[0].mxu0 %v270
      %v359 = vpop.f32.mrb[0].mxu0
      %v360 = vadd.f32 %v200, %v359
      %v361 = vpop.f32.mrb[0].mxu0
      %v362 = vpop.f32.mrb[0].mxu0
      %v363 = vadd.f32 %v200, %v362
      %v364 = vpop.f32.mrb[0].mxu0
      %365 = vmatprep.mubr.bf16.mxu0 0
      %366 = vmatmul.mubr.bf16.gmra.mrb[0].mxu0 %v273
      %v367 = vpop.f32.mrb[0].mxu0
      %v368 = vadd.f32 %v200, %v367
      %v369 = vpop.f32.mrb[0].mxu0
      %v370 = vpop.f32.mrb[0].mxu0
      %v371 = vadd.f32 %v200, %v370
      %v372 = vpop.f32.mrb[0].mxu0
      %373 = vmatprep.mubr.bf16.mxu0 0
      %374 = vmatmul.mubr.bf16.gmra.mrb[0].mxu0 %v276
      %v375 = vpop.f32.mrb[0].mxu0
      %v376 = vadd.f32 %v200, %v375
      %v377 = vpop.f32.mrb[0].mxu0
      %v378 = vpop.f32.mrb[0].mxu0
      %v379 = vadd.f32 %v200, %v378
      %v380 = vpop.f32.mrb[0].mxu0
      %381 = vdwg.mxu0
      %vm382 = vcmp.ge.f32.partialorder %v320, 0.0
      %vm383 = vcmp.ge.f32.partialorder %v323, 0.0
      %vm384 = vcmp.ge.f32.partialorder %v328, 0.0
      %vm385 = vcmp.ge.f32.partialorder %v331, 0.0
      %vm386 = vcmp.ge.f32.partialorder %v336, 0.0
      %vm387 = vcmp.ge.f32.partialorder %v339, 0.0
      %vm388 = vcmp.ge.f32.partialorder %v344, 0.0
      %vm389 = vcmp.ge.f32.partialorder %v347, 0.0
      %vm390 = vcmp.ge.f32.partialorder %v352, 0.0
      %vm391 = vcmp.ge.f32.partialorder %v355, 0.0
      %vm392 = vcmp.ge.f32.partialorder %v360, 0.0
      %vm393 = vcmp.ge.f32.partialorder %v363, 0.0
      %vm394 = vcmp.ge.f32.partialorder %v368, 0.0
      %vm395 = vcmp.ge.f32.partialorder %v371, 0.0
      %vm396 = vcmp.ge.f32.partialorder %v376, 0.0
      %vm397 = vcmp.ge.f32.partialorder %v379, 0.0
      %v398 = vmul.f32 %v320, 0.2
      %v399 = vmul.f32 %v323, 0.2
      %v400 = vmul.f32 %v328, 0.2
      %v401 = vmul.f32 %v331, 0.2
      %v402 = vmul.f32 %v336, 0.2
      %v403 = vmul.f32 %v339, 0.2
      %v404 = vmul.f32 %v344, 0.2
      %v405 = vmul.f32 %v347, 0.2
      %v406 = vmul.f32 %v352, 0.2
      %v407 = vmul.f32 %v355, 0.2
      %v408 = vmul.f32 %v360, 0.2
      %v409 = vmul.f32 %v363, 0.2
      %v410 = vmul.f32 %v368, 0.2
      %v411 = vmul.f32 %v371, 0.2
      %v412 = vmul.f32 %v376, 0.2
      %v413 = vmul.f32 %v379, 0.2
      %v414 = vsel %vm382, %v320, %v398
      %v415 = vsel %vm383, %v323, %v399
      %v416 = vsel %vm384, %v328, %v400
      %v417 = vsel %vm385, %v331, %v401
      %v418 = vsel %vm386, %v336, %v402
      %v419 = vsel %vm387, %v339, %v403
      %v420 = vsel %vm388, %v344, %v404
      %v421 = vsel %vm389, %v347, %v405
      %v422 = vsel %vm390, %v352, %v406
      %v423 = vsel %vm391, %v355, %v407
      %v424 = vsel %vm392, %v360, %v408
      %v425 = vsel %vm393, %v363, %v409
      %v426 = vsel %vm394, %v368, %v410
      %v427 = vsel %vm395, %v371, %v411
      %v428 = vsel %vm396, %v376, %v412
      %v429 = vsel %vm397, %v379, %v413
      %v430 = vpack.c.bf16 %v415, %v414
      %v431 = vpack.c.bf16 %v417, %v416
      %v432 = vpack.c.bf16 %v419, %v418
      %v433 = vpack.c.bf16 %v421, %v420
      %v434 = vpack.c.bf16 %v423, %v422
      %v435 = vpack.c.bf16 %v425, %v424
      %v436 = vpack.c.bf16 %v427, %v426
      %v437 = vpack.c.bf16 %v429, %v428
      %v446 = vunpack.c.l.b16 %v430
      %v447 = vunpack.c.h.b16 %v430
      %v448 = vunpack.c.l.b16 %v431
      %v449 = vunpack.c.h.b16 %v431
      %v450 = vunpack.c.l.b16 %v432
      %v451 = vunpack.c.h.b16 %v432
      %v452 = vunpack.c.l.b16 %v433
      %v453 = vunpack.c.h.b16 %v433
      %v454 = vunpack.c.l.b16 %v434
      %v455 = vunpack.c.h.b16 %v434
      %v456 = vunpack.c.l.b16 %v435
      %v457 = vunpack.c.h.b16 %v435
      %v458 = vunpack.c.l.b16 %v436
      %v459 = vunpack.c.h.b16 %v436
      %v460 = vunpack.c.l.b16 %v437
      %v461 = vunpack.c.h.b16 %v437
      %v462 = vpack.c.b16 %v446, %v446
      %v463 = vpack.c.b16 %v447, %v447
      %v464 = vpack.c.b16 %v448, %v448
      %v465 = vpack.c.b16 %v449, %v449
      %v466 = vpack.c.b16 %v450, %v450
      %v467 = vpack.c.b16 %v451, %v451
      %v468 = vpack.c.b16 %v452, %v452
      %v469 = vpack.c.b16 %v453, %v453
      %v470 = vpack.c.b16 %v454, %v454
      %v471 = vpack.c.b16 %v455, %v455
      %v472 = vpack.c.b16 %v456, %v456
      %v473 = vpack.c.b16 %v457, %v457
      %v474 = vpack.c.b16 %v458, %v458
      %v475 = vpack.c.b16 %v459, %v459
      %v476 = vpack.c.b16 %v460, %v460
      %v477 = vpack.c.b16 %v461, %v461
      %vm494 = vcmask 519168
      %495 = vst.msk [vmem:[%s172] sm:$0xf] %vm494, %v462
      %496 = vst.msk [vmem:[%s172 + $0x4] sm:$0xf] %vm494, %v463
      %497 = vst.msk [vmem:[%s172 + $0x8] sm:$0xf] %vm494, %v464
      %498 = vst.msk [vmem:[%s172 + $0xc] sm:$0xf] %vm494, %v465
      %499 = vst.msk [vmem:[%s172 + $0x10] sm:$0xf] %vm494, %v466
      %500 = vst.msk [vmem:[%s172 + $0x14] sm:$0xf] %vm494, %v467
      %501 = vst.msk [vmem:[%s172 + $0x18] sm:$0xf] %vm494, %v468
      %502 = vst.msk [vmem:[%s172 + $0x1c] sm:$0xf] %vm494, %v469
      %503 = vst.msk [vmem:[%s172 + $0x20] sm:$0xf] %vm494, %v470
      %504 = vst.msk [vmem:[%s172 + $0x24] sm:$0xf] %vm494, %v471
      %505 = vst.msk [vmem:[%s172 + $0x28] sm:$0xf] %vm494, %v472
      %506 = vst.msk [vmem:[%s172 + $0x2c] sm:$0xf] %vm494, %v473
      %507 = vst.msk [vmem:[%s172 + $0x30] sm:$0xf] %vm494, %v474
      %508 = vst.msk [vmem:[%s172 + $0x34] sm:$0xf] %vm494, %v475
      %509 = vst.msk [vmem:[%s172 + $0x38] sm:$0xf] %vm494, %v476
      %510 = vst.msk [vmem:[%s172 + $0x3c] sm:$0xf] %vm494, %v477
      %s511 = smul.u32 16, %s14
      %p512 = scmp.lt.s32.totalorder %s511, 31
      %s513 = scalar_select %p512, %s511, 31
      %s514 = smul.addr %s513, 4
      %s515 = scalar_lea.vmem %s3, %s514
      // Predicated region
      $region33: #{sphere_cnn_forward.2} parent=31 // pred_check
        %p516 = pneg %p100
      $region34: #{sphere_cnn_forward.2} parent=31 // pred_check_branch
        %518 = sbr.rel (%p516) target = $region36
      $region35: #{sphere_cnn_forward.2} parent=31 // pred_region
        %s519 = smul.u32 16, %s14
      $region36: #{sphere_cnn_forward.2} parent=31 // pred_fallthru
        _
    $region32: #{sphere_cnn_forward.2} parent=5 // pred_fallthru
      _
    %p520 = scmp.le.s32.totalorder 2, %s9
    // Predicated region
    $region37: #{sphere_cnn_forward.2} parent=5 // pred_check
      %p521 = pneg %p520
    $region38: #{sphere_cnn_forward.2} parent=5 // pred_check_branch
      %523 = sbr.rel (%p521) target = $region40
    $region39: #{sphere_cnn_forward.2} parent=5 // pred_region
      %s524 = ssub.s32 %s9, 2
      // Predicated region
      $region41: #{sphere_cnn_forward.2} parent=39 // pred_check
        %p525 = pneg %p106
      $region42: #{sphere_cnn_forward.2} parent=39 // pred_check_branch
        %527 = sbr.rel (%p525) target = $region44
      $region43: #{sphere_cnn_forward.2} parent=39 // pred_region
        %s528 = smul.u32 16, %s15
        %p529 = scmp.lt.s32.totalorder %s528, 31
        %s530 = scalar_select %p529, %s528, 31
        %s531 = smul.addr %s530, 4
        %s532 = scalar_lea.vmem %s3, %s531
      $region44: #{sphere_cnn_forward.2} parent=39 // pred_fallthru
        _
    $region40: #{sphere_cnn_forward.2} parent=5 // pred_fallthru
      _
  $region6: #{sphere_cnn_forward.2} parent=0 // loop_footer
    %s13 = sadd.s32 1, %s9
  $region7: #{sphere_cnn_forward.2} parent=0 // loop_footer_branch
    %8 = sbr.rel target = $region3
  $region8: #{sphere_cnn_forward.2} parent=0 // loop_exit
    _

// kernel: sphere_cnn_forward.3
$region0: #{sphere_cnn_forward.3}
  #allocation0 [shape = 'u32[]', space=smem, size = 0x4, offset = 0x4, fixed_abs, tag = 'smem constant byte address 0x4 - core index']
  #allocation1 [shape = 'u32[144,128]{1,0:T(1,128)}', space=vmem, size = 0x12000, scoped, tag = 'internal scratch']
  %s0 = inlined_call_operand.vmem [shape: bf16[64,576], index: 0, kind: input, shape index: {}]
  %s1 = inlined_call_operand.vmem [shape: bf16[576,128], index: 1, kind: input, shape index: {}]
  %s2 = inlined_call_operand.vmem [shape: f32[1,128], index: 2, kind: input, shape index: {}]
  %s3 = inlined_call_operand.vmem [shape: bf16[64,128], index: 3, kind: output, shape index: {}]
  %s4 = sld [smem:[#allocation0]]
  $region22: #{sphere_cnn_forward.3} parent=0
    _
  %s6 = ssub.s32 1, %s4
  %s7 = scalar_select 0, %s6, %s4
  // Predicated region
  $region2: #{sphere_cnn_forward.3} parent=0 // pred_check
    _
  $region3: #{sphere_cnn_forward.3} parent=0 // pred_check_branch
    %9 = sbr.rel (0) target = $region5
  $region4: #{sphere_cnn_forward.3} parent=0 // pred_region
    _
  $region5: #{sphere_cnn_forward.3} parent=0 // pred_fallthru
    _
  // Predicated region
  $region6: #{sphere_cnn_forward.3} parent=0 // pred_check
    _
  $region7: #{sphere_cnn_forward.3} parent=0 // pred_check_branch
    %11 = sbr.rel (0) target = $region9
  $region8: #{sphere_cnn_forward.3} parent=0 // pred_region
    _
  $region9: #{sphere_cnn_forward.3} parent=0 // pred_fallthru
    _
  // Predicated region
  $region10: #{sphere_cnn_forward.3} parent=0 // pred_check
    _
  $region11: #{sphere_cnn_forward.3} parent=0 // pred_check_branch
    %13 = sbr.rel (0) target = $region13
  $region12: #{sphere_cnn_forward.3} parent=0 // pred_region
    _
  $region13: #{sphere_cnn_forward.3} parent=0 // pred_fallthru
    _
  %v15 = vld [vmem:[%s0] sm:$0xff]
  %v16 = vld [vmem:[%s0 + $0x8] sm:$0xff]
  %v17 = vld [vmem:[%s0 + $0x10] sm:$0xf]
  %v18 = vld [vmem:[%s0 + $0x14] sm:$0xff]
  %v19 = vld [vmem:[%s0 + $0x1c] sm:$0xff]
  %v20 = vld [vmem:[%s0 + $0x24] sm:$0xf]
  %v21 = vld [vmem:[%s0 + $0x28] sm:$0xff]
  %v22 = vld [vmem:[%s0 + $0x30] sm:$0xff]
  %v23 = vld [vmem:[%s0 + $0x38] sm:$0xf]
  %v24 = vld [vmem:[%s0 + $0x3c] sm:$0xff]
  %v25 = vld [vmem:[%s0 + $0x44] sm:$0xff]
  %v26 = vld [vmem:[%s0 + $0x4c] sm:$0xf]
  %v27 = vld [vmem:[%s0 + $0x50] sm:$0xff]
  %v28 = vld [vmem:[%s0 + $0x58] sm:$0xff]
  %v29 = vld [vmem:[%s0 + $0x60] sm:$0xf]
  %v30 = vld [vmem:[%s0 + $0x64] sm:$0xff]
  %v31 = vld [vmem:[%s0 + $0x6c] sm:$0xff]
  %v32 = vld [vmem:[%s0 + $0x74] sm:$0xf]
  %v33 = vld [vmem:[%s0 + $0x78] sm:$0xff]
  %v34 = vld [vmem:[%s0 + $0x80] sm:$0xff]
  %v35 = vld [vmem:[%s0 + $0x88] sm:$0xf]
  %v36 = vld [vmem:[%s0 + $0x8c] sm:$0xff]
  %v37 = vld [vmem:[%s0 + $0x94] sm:$0xff]
  %v38 = vld [vmem:[%s0 + $0x9c] sm:$0xf]
  %v39 = vld [vmem:[%s1] sm:$0xf]
  %v40 = vld [vmem:[%s1 + $0x4] sm:$0xf]
  %v41 = vld [vmem:[%s1 + $0x8] sm:$0xf]
  %v42 = vld [vmem:[%s1 + $0xc] sm:$0xf]
  %v43 = vld [vmem:[%s1 + $0x10] sm:$0xf]
  %v44 = vld [vmem:[%s1 + $0x14] sm:$0xf]
  %v45 = vld [vmem:[%s1 + $0x18] sm:$0xf]
  %v46 = vld [vmem:[%s1 + $0x1c] sm:$0xf]
  %v47 = vld [vmem:[%s1 + $0x20] sm:$0xf]
  %v48 = vld [vmem:[%s1 + $0x24] sm:$0xf]
  %v49 = vld [vmem:[%s1 + $0x28] sm:$0xf]
  %v50 = vld [vmem:[%s1 + $0x2c] sm:$0xf]
  %v51 = vld [vmem:[%s1 + $0x30] sm:$0xf]
  %v52 = vld [vmem:[%s1 + $0x34] sm:$0xf]
  %v53 = vld [vmem:[%s1 + $0x38] sm:$0xf]
  %v54 = vld [vmem:[%s1 + $0x3c] sm:$0xf]
  %v55 = vld [vmem:[%s1 + $0x40] sm:$0xf]
  %v56 = vld [vmem:[%s1 + $0x44] sm:$0xf]
  %v57 = vld [vmem:[%s1 + $0x48] sm:$0xf]
  %v58 = vld [vmem:[%s1 + $0x4c] sm:$0xf]
  %v59 = vld [vmem:[%s1 + $0x50] sm:$0xf]
  %v60 = vld [vmem:[%s1 + $0x54] sm:$0xf]
  %v61 = vld [vmem:[%s1 + $0x58] sm:$0xf]
  %v62 = vld [vmem:[%s1 + $0x5c] sm:$0xf]
  %v63 = vld [vmem:[%s1 + $0x60] sm:$0xf]
  %v64 = vld [vmem:[%s1 + $0x64] sm:$0xf]
  %v65 = vld [vmem:[%s1 + $0x68] sm:$0xf]
  %v66 = vld [vmem:[%s1 + $0x6c] sm:$0xf]
  %v67 = vld [vmem:[%s1 + $0x70] sm:$0xf]
  %v68 = vld [vmem:[%s1 + $0x74] sm:$0xf]
  %v69 = vld [vmem:[%s1 + $0x78] sm:$0xf]
  %v70 = vld [vmem:[%s1 + $0x7c] sm:$0xf]
  %v71 = vld [vmem:[%s1 + $0x80] sm:$0xf]
  %v72 = vld [vmem:[%s1 + $0x84] sm:$0xf]
  %v73 = vld [vmem:[%s1 + $0x88] sm:$0xf]
  %v74 = vld [vmem:[%s1 + $0x8c] sm:$0xf]
  %v75 = vld [vmem:[%s1 + $0x90] sm:$0xf]
  %v76 = vld [vmem:[%s1 + $0x94] sm:$0xf]
  %v77 = vld [vmem:[%s1 + $0x98] sm:$0xf]
  %v78 = vld [vmem:[%s1 + $0x9c] sm:$0xf]
  %v79 = vld [vmem:[%s1 + $0xa0] sm:$0xf]
  %v80 = vld [vmem:[%s1 + $0xa4] sm:$0xf]
  %v81 = vld [vmem:[%s1 + $0xa8] sm:$0xf]
  %v82 = vld [vmem:[%s1 + $0xac] sm:$0xf]
  %v83 = vld [vmem:[%s1 + $0xb0] sm:$0xf]
  %v84 = vld [vmem:[%s1 + $0xb4] sm:$0xf]
  %v85 = vld [vmem:[%s1 + $0xb8] sm:$0xf]
  %v86 = vld [vmem:[%s1 + $0xbc] sm:$0xf]
  %v87 = vld [vmem:[%s1 + $0xc0] sm:$0xf]
  %v88 = vld [vmem:[%s1 + $0xc4] sm:$0xf]
  %v89 = vld [vmem:[%s1 + $0xc8] sm:$0xf]
  %v90 = vld [vmem:[%s1 + $0xcc] sm:$0xf]
  %v91 = vld [vmem:[%s1 + $0xd0] sm:$0xf]
  %v92 = vld [vmem:[%s1 + $0xd4] sm:$0xf]
  %v93 = vld [vmem:[%s1 + $0xd8] sm:$0xf]
  %v94 = vld [vmem:[%s1 + $0xdc] sm:$0xf]
  %v95 = vld [vmem:[%s1 + $0xe0] sm:$0xf]
  %v96 = vld [vmem:[%s1 + $0xe4] sm:$0xf]
  %v97 = vld [vmem:[%s1 + $0xe8] sm:$0xf]
  %v98 = vld [vmem:[%s1 + $0xec] sm:$0xf]
  %v99 = vld [vmem:[%s1 + $0xf0] sm:$0xf]
  %v100 = vld [vmem:[%s1 + $0xf4] sm:$0xf]
  %v101 = vld [vmem:[%s1 + $0xf8] sm:$0xf]
  %v102 = vld [vmem:[%s1 + $0xfc] sm:$0xf]
  %v103 = vld [vmem:[%s1 + $0x100] sm:$0xf]
  %v104 = vld [vmem:[%s1 + $0x104] sm:$0xf]
  %v105 = vld [vmem:[%s1 + $0x108] sm:$0xf]
  %v106 = vld [vmem:[%s1 + $0x10c] sm:$0xf]
  %v107 = vld [vmem:[%s1 + $0x110] sm:$0xf]
  %v108 = vld [vmem:[%s1 + $0x114] sm:$0xf]
  %v109 = vld [vmem:[%s1 + $0x118] sm:$0xf]
  %v110 = vld [vmem:[%s1 + $0x11c] sm:$0xf]
  %v111 = vld [vmem:[%s2] sm:$0x1]
  %v113 = vlaneseq
  %v114 = vshrl.u32 %v113, 7
  %v115 = vsub.s32 0, %v114
  %v116 = vrot.slane %v111, %v115
  %v142 = vunpack.c.l.b16 %v15
  %v143 = vunpack.c.h.b16 %v15
  %v144 = vunpack.c.l.b16 %v16
  %v145 = vunpack.c.h.b16 %v16
  %v146 = vunpack.c.l.b16 %v17
  %v147 = vunpack.c.l.b16 %v18
  %v148 = vunpack.c.h.b16 %v18
  %v149 = vunpack.c.l.b16 %v19
  %v150 = vunpack.c.h.b16 %v19
  %v151 = vunpack.c.l.b16 %v20
  %v152 = vunpack.c.l.b16 %v21
  %v153 = vunpack.c.h.b16 %v21
  %v154 = vunpack.c.l.b16 %v22
  %v155 = vunpack.c.h.b16 %v22
  %v156 = vunpack.c.l.b16 %v23
  %v157 = vunpack.c.l.b16 %v24
  %v158 = vunpack.c.h.b16 %v24
  %v159 = vunpack.c.l.b16 %v25
  %v160 = vunpack.c.h.b16 %v25
  %v161 = vunpack.c.l.b16 %v26
  %v162 = vunpack.c.l.b16 %v27
  %v163 = vunpack.c.h.b16 %v27
  %v164 = vunpack.c.l.b16 %v28
  %v165 = vunpack.c.h.b16 %v28
  %v166 = vunpack.c.l.b16 %v29
  %v167 = vunpack.c.l.b16 %v30
  %v168 = vunpack.c.h.b16 %v30
  %v169 = vunpack.c.l.b16 %v31
  %v170 = vunpack.c.h.b16 %v31
  %v171 = vunpack.c.l.b16 %v32
  %v172 = vunpack.c.l.b16 %v33
  %v173 = vunpack.c.h.b16 %v33
  %v174 = vunpack.c.l.b16 %v34
  %v175 = vunpack.c.h.b16 %v34
  %v176 = vunpack.c.l.b16 %v35
  %v177 = vunpack.c.l.b16 %v36
  %v178 = vunpack.c.h.b16 %v36
  %v179 = vunpack.c.l.b16 %v37
  %v180 = vunpack.c.h.b16 %v37
  %v181 = vunpack.c.l.b16 %v38
  %v182 = vpack.c.b16 %v147, %v142
  %v183 = vpack.c.b16 %v148, %v143
  %v184 = vpack.c.b16 %v149, %v144
  %v185 = vpack.c.b16 %v150, %v145
  %v186 = vpack.c.b16 %v151, %v146
  %v187 = vpack.c.b16 %v157, %v152
  %v188 = vpack.c.b16 %v158, %v153
  %v189 = vpack.c.b16 %v159, %v154
  %v190 = vpack.c.b16 %v160, %v155
  %v191 = vpack.c.b16 %v161, %v156
  %v192 = vpack.c.b16 %v167, %v162
  %v193 = vpack.c.b16 %v168, %v163
  %v194 = vpack.c.b16 %v169, %v164
  %v195 = vpack.c.b16 %v170, %v165
  %v196 = vpack.c.b16 %v171, %v166
  %v197 = vpack.c.b16 %v177, %v172
  %v198 = vpack.c.b16 %v178, %v173
  %v199 = vpack.c.b16 %v179, %v174
  %v200 = vpack.c.b16 %v180, %v175
  %v201 = vpack.c.b16 %v181, %v176
  %v290 = vunpack.c.l.b16 %v39
  %v291 = vunpack.c.l.b16 %v40
  %v292 = vunpack.c.l.b16 %v41
  %v293 = vunpack.c.l.b16 %v42
  %v294 = vunpack.c.l.b16 %v43
  %v295 = vunpack.c.l.b16 %v44
  %v296 = vunpack.c.l.b16 %v45
  %v297 = vunpack.c.l.b16 %v46
  %v298 = vunpack.c.l.b16 %v47
  %v299 = vunpack.c.l.b16 %v48
  %v300 = vunpack.c.l.b16 %v49
  %v301 = vunpack.c.l.b16 %v50
  %v302 = vunpack.c.l.b16 %v51
  %v303 = vunpack.c.l.b16 %v52
  %v304 = vunpack.c.l.b16 %v53
  %v305 = vunpack.c.l.b16 %v54
  %v306 = vunpack.c.l.b16 %v55
  %v307 = vunpack.c.l.b16 %v56
  %v308 = vunpack.c.l.b16 %v57
  %v309 = vunpack.c.l.b16 %v58
  %v310 = vunpack.c.l.b16 %v59
  %v311 = vunpack.c.l.b16 %v60
  %v312 = vunpack.c.l.b16 %v61
  %v313 = vunpack.c.l.b16 %v62
  %v314 = vunpack.c.l.b16 %v63
  %v315 = vunpack.c.l.b16 %v64
  %v316 = vunpack.c.l.b16 %v65
  %v317 = vunpack.c.l.b16 %v66
  %v318 = vunpack.c.l.b16 %v67
  %v319 = vunpack.c.l.b16 %v68
  %v320 = vunpack.c.l.b16 %v69
  %v321 = vunpack.c.l.b16 %v70
  %v322 = vunpack.c.l.b16 %v71
  %v323 = vunpack.c.l.b16 %v72
  %v324 = vunpack.c.l.b16 %v73
  %v325 = vunpack.c.l.b16 %v74
  %v326 = vunpack.c.l.b16 %v75
  %v327 = vunpack.c.l.b16 %v76
  %v328 = vunpack.c.l.b16 %v77
  %v329 = vunpack.c.l.b16 %v78
  %v330 = vunpack.c.l.b16 %v79
  %v331 = vunpack.c.l.b16 %v80
  %v332 = vunpack.c.l.b16 %v81
  %v333 = vunpack.c.l.b16 %v82
  %v334 = vunpack.c.l.b16 %v83
  %v335 = vunpack.c.l.b16 %v84
  %v336 = vunpack.c.l.b16 %v85
  %v337 = vunpack.c.l.b16 %v86
  %v338 = vunpack.c.l.b16 %v87
  %v339 = vunpack.c.l.b16 %v88
  %v340 = vunpack.c.l.b16 %v89
  %v341 = vunpack.c.l.b16 %v90
  %v342 = vunpack.c.l.b16 %v91
  %v343 = vunpack.c.l.b16 %v92
  %v344 = vunpack.c.l.b16 %v93
  %v345 = vunpack.c.l.b16 %v94
  %v346 = vunpack.c.l.b16 %v95
  %v347 = vunpack.c.l.b16 %v96
  %v348 = vunpack.c.l.b16 %v97
  %v349 = vunpack.c.l.b16 %v98
  %v350 = vunpack.c.l.b16 %v99
  %v351 = vunpack.c.l.b16 %v100
  %v352 = vunpack.c.l.b16 %v101
  %v353 = vunpack.c.l.b16 %v102
  %v354 = vunpack.c.l.b16 %v103
  %v355 = vunpack.c.l.b16 %v104
  %v356 = vunpack.c.l.b16 %v105
  %v357 = vunpack.c.l.b16 %v106
  %v358 = vunpack.c.l.b16 %v107
  %v359 = vunpack.c.l.b16 %v108
  %v360 = vunpack.c.l.b16 %v109
  %v361 = vunpack.c.l.b16 %v110
  %v362 = vpack.c.b16 %v291, %v290
  %v363 = vpack.c.b16 %v293, %v292
  %v364 = vpack.c.b16 %v295, %v294
  %v365 = vpack.c.b16 %v297, %v296
  %v366 = vpack.c.b16 %v299, %v298
  %v367 = vpack.c.b16 %v301, %v300
  %v368 = vpack.c.b16 %v303, %v302
  %v369 = vpack.c.b16 %v305, %v304
  %v370 = vpack.c.b16 %v307, %v306
  %v371 = vpack.c.b16 %v309, %v308
  %v372 = vpack.c.b16 %v311, %v310
  %v373 = vpack.c.b16 %v313, %v312
  %v374 = vpack.c.b16 %v315, %v314
  %v375 = vpack.c.b16 %v317, %v316
  %v376 = vpack.c.b16 %v319, %v318
  %v377 = vpack.c.b16 %v321, %v320
  %v378 = vpack.c.b16 %v323, %v322
  %v379 = vpack.c.b16 %v325, %v324
  %v380 = vpack.c.b16 %v327, %v326
  %v381 = vpack.c.b16 %v329, %v328
  %v382 = vpack.c.b16 %v331, %v330
  %v383 = vpack.c.b16 %v333, %v332
  %v384 = vpack.c.b16 %v335, %v334
  %v385 = vpack.c.b16 %v337, %v336
  %v386 = vpack.c.b16 %v339, %v338
  %v387 = vpack.c.b16 %v341, %v340
  %v388 = vpack.c.b16 %v343, %v342
  %v389 = vpack.c.b16 %v345, %v344
  %v390 = vpack.c.b16 %v347, %v346
  %v391 = vpack.c.b16 %v349, %v348
  %v392 = vpack.c.b16 %v351, %v350
  %v393 = vpack.c.b16 %v353, %v352
  %v394 = vpack.c.b16 %v355, %v354
  %v395 = vpack.c.b16 %v357, %v356
  %v396 = vpack.c.b16 %v359, %v358
  %v397 = vpack.c.b16 %v361, %v360
  %vm434 = vcmask 523264
  %v436 = vsel %vm434, %v186, 0
  %v439 = vsel %vm434, %v191, 0
  %v442 = vsel %vm434, %v196, 0
  %v445 = vsel %vm434, %v201, 0
  %447 = vmatprep.subr.bf16.mxu0 0
  %448 = vmatpush1.bf16.msra.mxu0 %v362
  %449 = vmatprep.subr.bf16.mxu0 0
  %450 = vmatpush1.bf16.msra.mxu0 %v363
  %451 = vmatprep.subr.bf16.mxu0 0
  %452 = vmatpush1.bf16.msra.mxu0 %v364
  %453 = vmatprep.subr.bf16.mxu0 0
  %454 = vmatpush1.bf16.msra.mxu0 %v365
  %455 = vmatprep.subr.bf16.mxu0 0
  %456 = vmatpush1.bf16.msra.mxu0 %v366
  %457 = vmatprep.subr.bf16.mxu0 0
  %458 = vmatpush1.bf16.msra.mxu0 %v367
  %459 = vmatprep.subr.bf16.mxu0 0
  %460 = vmatpush1.bf16.msra.mxu0 %v368
  %461 = vmatprep.subr.bf16.mxu0 0
  %462 = vmatpush1.bf16.msra.mxu0 %v369
  %463 = vmatprep.subr.bf16.mxu0 0
  %464 = vmatpush1.bf16.msra.mxu0 %v370
  %465 = vmatprep.subr.bf16.mxu0 0
  %466 = vmatpush1.bf16.msra.mxu0 %v371
  %467 = vmatprep.subr.bf16.mxu0 0
  %468 = vmatpush1.bf16.msra.mxu0 %v372
  %469 = vmatprep.subr.bf16.mxu0 0
  %470 = vmatpush1.bf16.msra.mxu0 %v373
  %471 = vmatprep.subr.bf16.mxu0 0
  %472 = vmatpush1.bf16.msra.mxu0 %v374
  %473 = vmatprep.subr.bf16.mxu0 0
  %474 = vmatpush1.bf16.msra.mxu0 %v375
  %475 = vmatprep.subr.bf16.mxu0 0
  %476 = vmatpush1.bf16.msra.mxu0 %v376
  %477 = vmatprep.subr.bf16.mxu0 0
  %478 = vmatpush1.bf16.msra.mxu0 %v377
  %479 = vmatprep.mubr.bf16.mxu0 %v183
  %480 = vmatmul.mubr.bf16.gmra.mrb[0].mxu0 %v182
  %v481 = vpop.f32.mrb[0].mxu0
  %v482 = vadd.f32 %v116, %v481
  %v483 = vpop.f32.mrb[0].mxu0
  %v484 = vpop.f32.mrb[0].mxu0
  %v485 = vadd.f32 %v116, %v484
  %v486 = vpop.f32.mrb[0].mxu0
  %487 = vmatprep.mubr.bf16.mxu0 %v188
  %488 = vmatmul.mubr.bf16.gmra.mrb[0].mxu0 %v187
  %v489 = vpop.f32.mrb[0].mxu0
  %v490 = vadd.f32 %v116, %v489
  %v491 = vpop.f32.mrb[0].mxu0
  %v492 = vpop.f32.mrb[0].mxu0
  %v493 = vadd.f32 %v116, %v492
  %v494 = vpop.f32.mrb[0].mxu0
  %495 = vmatprep.mubr.bf16.mxu0 %v193
  %496 = vmatmul.mubr.bf16.gmra.mrb[0].mxu0 %v192
  %v497 = vpop.f32.mrb[0].mxu0
  %v498 = vadd.f32 %v116, %v497
  %v499 = vpop.f32.mrb[0].mxu0
  %v500 = vpop.f32.mrb[0].mxu0
  %v501 = vadd.f32 %v116, %v500
  %v502 = vpop.f32.mrb[0].mxu0
  %503 = vmatprep.mubr.bf16.mxu0 %v198
  %504 = vmatmul.mubr.bf16.gmra.mrb[0].mxu0 %v197
  %v505 = vpop.f32.mrb[0].mxu0
  %v506 = vadd.f32 %v116, %v505
  %v507 = vpop.f32.mrb[0].mxu0
  %v508 = vpop.f32.mrb[0].mxu0
  %v509 = vadd.f32 %v116, %v508
  %v510 = vpop.f32.mrb[0].mxu0
  %511 = vdwg.mxu0
  %512 = vmatprep.subr.bf16.mxu0 0
  %513 = vmatpush1.bf16.msra.mxu0 %v378
  %514 = vmatprep.subr.bf16.mxu0 0
  %515 = vmatpush1.bf16.msra.mxu0 %v379
  %516 = vmatprep.subr.bf16.mxu0 0
  %517 = vmatpush1.bf16.msra.mxu0 %v380
  %518 = vmatprep.subr.bf16.mxu0 0
  %519 = vmatpush1.bf16.msra.mxu0 %v381
  %520 = vmatprep.subr.bf16.mxu0 0
  %521 = vmatpush1.bf16.msra.mxu0 %v382
  %522 = vmatprep.subr.bf16.mxu0 0
  %523 = vmatpush1.bf16.msra.mxu0 %v383
  %524 = vmatprep.subr.bf16.mxu0 0
  %525 = vmatpush1.bf16.msra.mxu0 %v384
  %526 = vmatprep.subr.bf16.mxu0 0
  %527 = vmatpush1.bf16.msra.mxu0 %v385
  %528 = vmatprep.subr.bf16.mxu0 0
  %529 = vmatpush1.bf16.msra.mxu0 %v386
  %530 = vmatprep.subr.bf16.mxu0 0
  %531 = vmatpush1.bf16.msra.mxu0 %v387
  %532 = vmatprep.subr.bf16.mxu0 0
  %533 = vmatpush1.bf16.msra.mxu0 %v388
  %534 = vmatprep.subr.bf16.mxu0 0
  %535 = vmatpush1.bf16.msra.mxu0 %v389
  %536 = vmatprep.subr.bf16.mxu0 0
  %537 = vmatpush1.bf16.msra.mxu0 %v390
  %538 = vmatprep.subr.bf16.mxu0 0
  %539 = vmatpush1.bf16.msra.mxu0 %v391
  %540 = vmatprep.subr.bf16.mxu0 0
  %541 = vmatpush1.bf16.msra.mxu0 %v392
  %542 = vmatprep.subr.bf16.mxu0 0
  %543 = vmatpush1.bf16.msra.mxu0 %v393
  %544 = vmatprep.mubr.bf16.mxu0 %v185
  %545 = vmatmul.mubr.bf16.gmra.mrb[0].mxu0 %v184
  %v546 = vpop.f32.mrb[0].mxu0
  %v547 = vadd.f32 %v482, %v546
  %v548 = vpop.f32.mrb[0].mxu0
  %v549 = vpop.f32.mrb[0].mxu0
  %v550 = vadd.f32 %v485, %v549
  %v551 = vpop.f32.mrb[0].mxu0
  %552 = vmatprep.mubr.bf16.mxu0 %v190
  %553 = vmatmul.mubr.bf16.gmra.mrb[0].mxu0 %v189
  %v554 = vpop.f32.mrb[0].mxu0
  %v555 = vadd.f32 %v490, %v554
  %v556 = vpop.f32.mrb[0].mxu0
  %v557 = vpop.f32.mrb[0].mxu0
  %v558 = vadd.f32 %v493, %v557
  %v559 = vpop.f32.mrb[0].mxu0
  %560 = vmatprep.mubr.bf16.mxu0 %v195
  %561 = vmatmul.mubr.bf16.gmra.mrb[0].mxu0 %v194
  %v562 = vpop.f32.mrb[0].mxu0
  %v563 = vadd.f32 %v498, %v562
  %v564 = vpop.f32.mrb[0].mxu0
  %v565 = vpop.f32.mrb[0].mxu0
  %v566 = vadd.f32 %v501, %v565
  %v567 = vpop.f32.mrb[0].mxu0
  %568 = vmatprep.mubr.bf16.mxu0 %v200
  %569 = vmatmul.mubr.bf16.gmra.mrb[0].mxu0 %v199
  %v570 = vpop.f32.mrb[0].mxu0
  %v571 = vadd.f32 %v506, %v570
  %v572 = vpop.f32.mrb[0].mxu0
  %v573 = vpop.f32.mrb[0].mxu0
  %v574 = vadd.f32 %v509, %v573
  %v575 = vpop.f32.mrb[0].mxu0
  %576 = vdwg.mxu0
  %577 = vmatprep.subr.bf16.mxu0 0
  %578 = vmatpush1.bf16.msra.mxu0 %v394
  %579 = vmatprep.subr.bf16.mxu0 0
  %580 = vmatpush1.bf16.msra.mxu0 %v395
  %581 = vmatprep.subr.bf16.mxu0 0
  %582 = vmatpush1.bf16.msra.mxu0 %v396
  %583 = vmatprep.subr.bf16.mxu0 0
  %584 = vmatpush1.bf16.msra.mxu0 %v397
  %585 = vmatprep.subr.bf16.mxu0 0
  %586 = vmatpush1.bf16.msra.mxu0 0
  %587 = vmatprep.subr.bf16.mxu0 0
  %588 = vmatpush1.bf16.msra.mxu0 0
  %589 = vmatprep.subr.bf16.mxu0 0
  %590 = vmatpush1.bf16.msra.mxu0 0
  %591 = vmatprep.subr.bf16.mxu0 0
  %592 = vmatpush1.bf16.msra.mxu0 0
  %593 = vmatprep.subr.bf16.mxu0 0
  %594 = vmatpush1.bf16.msra.mxu0 0
  %595 = vmatprep.subr.bf16.mxu0 0
  %596 = vmatpush1.bf16.msra.mxu0 0
  %597 = vmatprep.subr.bf16.mxu0 0
  %598 = vmatpush1.bf16.msra.mxu0 0
  %599 = vmatprep.subr.bf16.mxu0 0
  %600 = vmatpush1.bf16.msra.mxu0 0
  %601 = vmatprep.subr.bf16.mxu0 0
  %602 = vmatpush1.bf16.msra.mxu0 0
  %603 = vmatprep.subr.bf16.mxu0 0
  %604 = vmatpush1.bf16.msra.mxu0 0
  %605 = vmatprep.subr.bf16.mxu0 0
  %606 = vmatpush1.bf16.msra.mxu0 0
  %607 = vmatprep.subr.bf16.mxu0 0
  %608 = vmatpush1.bf16.msra.mxu0 0
  %609 = vmatprep.mubr.bf16.mxu0 0
  %610 = vmatmul.mubr.bf16.gmra.mrb[0].mxu0 %v436
  %v611 = vpop.f32.mrb[0].mxu0
  %v612 = vadd.f32 %v547, %v611
  %v613 = vpop.f32.mrb[0].mxu0
  %v614 = vpop.f32.mrb[0].mxu0
  %v615 = vadd.f32 %v550, %v614
  %v616 = vpop.f32.mrb[0].mxu0
  %617 = vmatprep.mubr.bf16.mxu0 0
  %618 = vmatmul.mubr.bf16.gmra.mrb[0].mxu0 %v439
  %v619 = vpop.f32.mrb[0].mxu0
  %v620 = vadd.f32 %v555, %v619
  %v621 = vpop.f32.mrb[0].mxu0
  %v622 = vpop.f32.mrb[0].mxu0
  %v623 = vadd.f32 %v558, %v622
  %v624 = vpop.f32.mrb[0].mxu0
  %625 = vmatprep.mubr.bf16.mxu0 0
  %626 = vmatmul.mubr.bf16.gmra.mrb[0].mxu0 %v442
  %v627 = vpop.f32.mrb[0].mxu0
  %v628 = vadd.f32 %v563, %v627
  %v629 = vpop.f32.mrb[0].mxu0
  %v630 = vpop.f32.mrb[0].mxu0
  %v631 = vadd.f32 %v566, %v630
  %v632 = vpop.f32.mrb[0].mxu0
  %633 = vmatprep.mubr.bf16.mxu0 0
  %634 = vmatmul.mubr.bf16.gmra.mrb[0].mxu0 %v445
  %v635 = vpop.f32.mrb[0].mxu0
  %v636 = vadd.f32 %v571, %v635
  %v637 = vpop.f32.mrb[0].mxu0
  %v638 = vpop.f32.mrb[0].mxu0
  %v639 = vadd.f32 %v574, %v638
  %v640 = vpop.f32.mrb[0].mxu0
  %641 = vdwg.mxu0
  %vm642 = vcmp.ge.f32.partialorder %v612, 0.0
  %vm643 = vcmp.ge.f32.partialorder %v615, 0.0
  %vm644 = vcmp.ge.f32.partialorder %v620, 0.0
  %vm645 = vcmp.ge.f32.partialorder %v623, 0.0
  %vm646 = vcmp.ge.f32.partialorder %v628, 0.0
  %vm647 = vcmp.ge.f32.partialorder %v631, 0.0
  %vm648 = vcmp.ge.f32.partialorder %v636, 0.0
  %vm649 = vcmp.ge.f32.partialorder %v639, 0.0
  %v650 = vmul.f32 %v612, 0.2
  %v651 = vmul.f32 %v615, 0.2
  %v652 = vmul.f32 %v620, 0.2
  %v653 = vmul.f32 %v623, 0.2
  %v654 = vmul.f32 %v628, 0.2
  %v655 = vmul.f32 %v631, 0.2
  %v656 = vmul.f32 %v636, 0.2
  %v657 = vmul.f32 %v639, 0.2
  %v658 = vsel %vm642, %v612, %v650
  %v659 = vsel %vm643, %v615, %v651
  %v660 = vsel %vm644, %v620, %v652
  %v661 = vsel %vm645, %v623, %v653
  %v662 = vsel %vm646, %v628, %v654
  %v663 = vsel %vm647, %v631, %v655
  %v664 = vsel %vm648, %v636, %v656
  %v665 = vsel %vm649, %v639, %v657
  %v666 = vpack.c.bf16 %v659, %v658
  %v667 = vpack.c.bf16 %v661, %v660
  %v668 = vpack.c.bf16 %v663, %v662
  %v669 = vpack.c.bf16 %v665, %v664
  %v674 = vunpack.c.l.b16 %v666
  %v675 = vunpack.c.h.b16 %v666
  %v676 = vunpack.c.l.b16 %v667
  %v677 = vunpack.c.h.b16 %v667
  %v678 = vunpack.c.l.b16 %v668
  %v679 = vunpack.c.h.b16 %v668
  %v680 = vunpack.c.l.b16 %v669
  %v681 = vunpack.c.h.b16 %v669
  %v682 = vpack.c.b16 %v674, %v674
  %v683 = vpack.c.b16 %v675, %v675
  %v684 = vpack.c.b16 %v676, %v676
  %v685 = vpack.c.b16 %v677, %v677
  %v686 = vpack.c.b16 %v678, %v678
  %v687 = vpack.c.b16 %v679, %v679
  %v688 = vpack.c.b16 %v680, %v680
  %v689 = vpack.c.b16 %v681, %v681
  %698 = vst [vmem:[%s3] sm:$0xf] %v682
  %699 = vst [vmem:[%s3 + $0x4] sm:$0xf] %v683
  %700 = vst [vmem:[%s3 + $0x8] sm:$0xf] %v684
  %701 = vst [vmem:[%s3 + $0xc] sm:$0xf] %v685
  %702 = vst [vmem:[%s3 + $0x10] sm:$0xf] %v686
  %703 = vst [vmem:[%s3 + $0x14] sm:$0xf] %v687
  %704 = vst [vmem:[%s3 + $0x18] sm:$0xf] %v688
  %705 = vst [vmem:[%s3 + $0x1c] sm:$0xf] %v689
  // Predicated region
  $region14: #{sphere_cnn_forward.3} parent=0 // pred_check
    _
  $region15: #{sphere_cnn_forward.3} parent=0 // pred_check_branch
    %707 = sbr.rel (0) target = $region17
  $region16: #{sphere_cnn_forward.3} parent=0 // pred_region
    _
  $region17: #{sphere_cnn_forward.3} parent=0 // pred_fallthru
    _
  // Predicated region
  $region18: #{sphere_cnn_forward.3} parent=0 // pred_check
    _
  $region19: #{sphere_cnn_forward.3} parent=0 // pred_check_branch
    %709 = sbr.rel (0) target = $region21
  $region20: #{sphere_cnn_forward.3} parent=0 // pred_region
    _
  $region21: #{sphere_cnn_forward.3} parent=0 // pred_fallthru
    _

</llo_original>
